<compile_context>
chip_gen: v5e
topology: v5e:2x2
jax: 0.10.0
libtpu: 0.0.40
codegen_flags: <defaults>
</compile_context>

<pallas_src>
import jax
import jax.numpy as jnp
from jax import lax
from jax.experimental import pallas as pl
from jax.experimental.pallas import tpu as pltpu

NEG_BIG = -1e30  # bias for padded logit lanes; exp(NEG_BIG - m) underflows to 0.


# ---------------------------------------------------------------------------
# Fused kernel: heat kernel + xs + 2-layer GCN + MLP head + log_softmax.
# Grid-less: the whole (tiny) batch stays resident in VMEM for the forward.
#
# Operand shapes (all f32):
#   graphs_ref : (2*BN, BN)   rows [0:BN]   = interleaved block-diag eigvec
#                             rows [BN:2BN] = interleaved block-diag adj
#   x_ref      : (BN, p)      r-major stacked node features (row = r*B + b)
#   n2lt_ref   : (1, BN)      -2 * lam * t[label]  (same r-major column order)
#   wgcn_ref   : (2*pa+h, h)  rows [0:p]=W1_x, [pa:pa+p]=W1_xs, [2pa:2pa+h]=W2
#   wl1_ref    : (n*h, half)  head layer-1 weight (row = r*h + k)
#   wl2_ref    : (half, c_pad) head layer-2 weight, classes padded to c_pad
#   bias_ref   : (2, bw)      row0[:half]=bl1, row1[:c_pad]=bl2 (pad = -1e30)
# Outputs:
#   x0_ref     : (BN, h)      GCN output, r-major rows (single full store)
#   logp_ref   : (B, c_pad)   log-softmax over padded classes
# ---------------------------------------------------------------------------
def agt_fused_kernel(graphs_ref, x_ref, n2lt_ref, wgcn_ref,
                     wl1_ref, wl2_ref, bias_ref,
                     x0_ref, logp_ref):
    BN, p = x_ref.shape
    hid = x0_ref.shape[1]
    B, c_pad = logp_ref.shape
    n_roi = BN // B
    half = wl1_ref.shape[1]
    pa = ((p + 7) // 8) * 8            # sublane-aligned offset inside wgcn pack

    # --- batched (interleaved block-diagonal) heat kernel -------------------
    ev = graphs_ref[0:BN, :]                         # (BN, BN)
    adj = graphs_ref[BN:2 * BN, :]                   # (BN, BN)
    x = x_ref[...]                                   # (BN, p)

    scaled = jnp.exp(n2lt_ref[...])                  # (1, BN), one fused exp
    left = ev * scaled                               # per-column scaling
    # hk = left @ ev^T, expressed via contraction dims (no explicit transpose).
    hk = lax.dot_general(left, ev, (((1,), (1,)), ((), ())),
                         preferred_element_type=jnp.float32)
    hk = jnp.where(hk < 1e-5, 0.0, hk)               # threshold (off-blocks stay 0)

    # --- xs and 2-layer GCN, each as ONE 32-row matmul -----------------------
    xs = jnp.dot(hk, x, preferred_element_type=jnp.float32)       # (BN, p)

    w1a = wgcn_ref[0:p, :]                           # x-half of W1
    w1b = wgcn_ref[pa:pa + p, :]                     # xs-half of W1
    w2 = wgcn_ref[2 * pa:2 * pa + hid, :]

    s1 = (jnp.dot(x, w1a, preferred_element_type=jnp.float32)
          + jnp.dot(xs, w1b, preferred_element_type=jnp.float32))  # (BN, h)
    r1 = jnp.maximum(jnp.dot(adj, s1, preferred_element_type=jnp.float32), 0.0)
    s2 = jnp.dot(r1, w2, preferred_element_type=jnp.float32)
    x0 = jnp.maximum(jnp.dot(adj, s2, preferred_element_type=jnp.float32), 0.0)  # (BN, h)

    # ONE full-block store (no per-row masked scatter).
    x0_ref[...] = x0

    # --- MLP head directly from the in-register activations ------------------
    # hid_act[b] = relu( sum_r x0[r*B+b, :] @ Wl1[r*h:(r+1)*h, :] + bl1 )
    wl1 = wl1_ref[...]
    bl1 = bias_ref[0:1, 0:half]                      # (1, half)
    acc = jnp.zeros((B, half), jnp.float32) + bl1
    for r in range(n_roi):                           # static, contiguous slices
        acc = acc + jnp.dot(x0[r * B:(r + 1) * B, :],
                            wl1[r * hid:(r + 1) * hid, :],
                            preferred_element_type=jnp.float32)
    hid_act = jnp.maximum(acc, 0.0)                  # (B, half)

    bl2 = bias_ref[1:2, 0:c_pad]                     # (1, c_pad), pads = -1e30
    logits = jnp.dot(hid_act, wl2_ref[...],
                     preferred_element_type=jnp.float32) + bl2
    m = jnp.max(logits, axis=-1, keepdims=True)
    z = logits - m
    lse = jnp.log(jnp.sum(jnp.exp(z), axis=-1, keepdims=True))
    logp_ref[...] = z - lse


# ---------------------------------------------------------------------------
# Jittable dist_between_cls: fixed-nclass one-hot class means + masked terms.
# (Matches the torch unique()-based version when observed labels are the
#  contiguous set 0..k-1 -- the module's implicit assumption since `t` is
#  indexed by label.)
# ---------------------------------------------------------------------------
def dist_between_cls(x0_flat, label, nclass):
    oh = jax.nn.one_hot(label, nclass, dtype=x0_flat.dtype)        # (B, C)
    counts = jnp.sum(oh, axis=0)                                   # (C,)
    means = (oh.T @ x0_flat) / jnp.maximum(counts, 1.0)[:, None]   # (C, F)
    num_present = jnp.sum((counts > 0).astype(jnp.int32))

    def dist(a, b):
        return jnp.sqrt(jnp.sum((a - b) ** 2))

    loss = jnp.float32(0.0)
    for ci in range(nclass - 2):
        term = jax.nn.relu(dist(means[ci], means[ci + 1])
                           + dist(means[ci + 1], means[ci + 2])
                           - dist(means[ci], means[ci + 2]))
        loss = loss + jnp.where(ci + 2 < num_present, term, 0.0)
    denom = jnp.maximum(num_present - 2, 1).astype(jnp.float32)
    return jnp.where(num_present >= 3, loss / denom, jnp.float32(0.0))


# ---------------------------------------------------------------------------
# Full AGT forward (inference) -- single jit, single pallas_call.
# ---------------------------------------------------------------------------
@jax.jit
def agt_forward(params, x, adj, eigenvalue, eigenvector, label):
    B, n, p = x.shape
    h = params["gc2_w"].shape[1]
    half = params["lin1_w"].shape[1]
    c = params["lin2_w"].shape[1]
    nclass = params["t"].shape[0]
    BN = B * n
    c_pad = max(128, ((c + 127) // 128) * 128)
    bw = max(c_pad, half)

    f32 = jnp.float32
    eyeB = jnp.eye(B, dtype=f32)

    def interleave_block_diag(a):
        # (B, n, n) -> (BN, BN) with row/col index = r*B + b, per-sample blocks
        # on the "diagonal" of the interleaved ordering, zeros elsewhere.
        t4 = a.astype(f32)[:, :, :, None] * eyeB[:, None, None, :]   # (B,n,n,B)
        return t4.transpose(1, 0, 2, 3).reshape(BN, BN)

    ev_bd = interleave_block_diag(eigenvector)
    adj_bd = interleave_block_diag(adj)
    graphs = jnp.concatenate([ev_bd, adj_bd], axis=0)                # (2BN, BN)

    x_st = jnp.transpose(x.astype(f32), (1, 0, 2)).reshape(BN, p)    # r-major

    t_label = params["t"][label]                                     # (B, n)
    n2lt = (-2.0 * eigenvalue.astype(f32) * t_label.astype(f32))
    n2lt = jnp.transpose(n2lt, (1, 0)).reshape(1, BN)                # r-major

    # Pack the three GCN weights into one sublane-aligned slab.
    pa = ((p + 7) // 8) * 8
    wgcn = jnp.zeros((2 * pa + h, h), f32)
    wgcn = wgcn.at[:p].set(params["gc1_w"][:p])          # W1, x half
    wgcn = wgcn.at[pa:pa + p].set(params["gc1_w"][p:])   # W1, xs half
    wgcn = wgcn.at[2 * pa:2 * pa + h].set(params["gc2_w"])

    wl1 = params["lin1_w"].astype(f32)                               # (n*h, half)
    wl2_pad = jnp.zeros((half, c_pad), f32).at[:, :c].set(params["lin2_w"])
    bias_pack = jnp.zeros((2, bw), f32)
    bias_pack = bias_pack.at[0, :half].set(params["lin1_b"])
    bias_pack = bias_pack.at[1, :c_pad].set(NEG_BIG)
    bias_pack = bias_pack.at[1, :c].set(params["lin2_b"])

    vmem_spec = pl.BlockSpec(memory_space=pltpu.MemorySpace.VMEM)
    x0_rm, logp_pad = pl.pallas_call(
        agt_fused_kernel,
        out_shape=(jax.ShapeDtypeStruct((BN, h), f32),
                   jax.ShapeDtypeStruct((B, c_pad), f32)),
        in_specs=[vmem_spec] * 7,
        out_specs=(vmem_spec, vmem_spec),
    )(graphs, x_st, n2lt, wgcn, wl1, wl2_pad, bias_pack)

    log_probs = logp_pad[:, :c]
    # r-major (BN, h) -> (B, n*h) flatten for the dist loss (free XLA reshape).
    x0_flat = x0_rm.reshape(n, B, h).transpose(1, 0, 2).reshape(B, n * h)
    dist_loss = dist_between_cls(x0_flat, label, nclass)
    return log_probs, dist_loss


# ---------------------------------------------------------------------------
# Pure-JAX eager reference (mirrors the torch code path, incl. power + unique).
# ---------------------------------------------------------------------------
def dist_between_cls_ref(x0_flat, label):
    uniq = jnp.unique(label)
    num_classes = int(uniq.shape[0])
    if num_classes < 3:
        return jnp.float32(0.0)
    means = [jnp.mean(x0_flat[label == cidx], axis=0) for cidx in range(num_classes)]
    d = lambda a, b_: jnp.sqrt(jnp.sum((a - b_) ** 2))
    dist_adj = [d(means[i], means[i + 1]) for i in range(num_classes - 1)]
    dist_adj2 = [d(means[i], means[i + 2]) for i in range(num_classes - 2)]
    loss = jax.nn.relu(dist_adj[0] + dist_adj[1] - dist_adj2[0])
    for ci in range(1, num_classes - 2):
        loss = loss + jax.nn.relu(dist_adj[ci] + dist_adj[ci + 1] - dist_adj2[ci])
    return loss / (num_classes - 2)


def agt_reference(params, x, adj, eigenvalue, eigenvector, label):
    t_label = params["t"][label]                                   # (b, n)
    base = jnp.exp(-2.0 * eigenvalue)[:, None, :]                  # (b, 1, n)
    eigval = jnp.power(jnp.ones_like(eigenvector) * base, t_label[:, None, :])
    left = eigenvector * eigval
    hk = jnp.einsum("bij,bkj->bik", left, eigenvector)
    hk = jnp.where(hk < 1e-5, 0.0, hk)
    xs = jnp.einsum("bnm,bmp->bnp", hk, x)
    xc = jnp.concatenate([x, xs], axis=-1)
    h1 = jax.nn.relu(jnp.einsum("bnm,bmh->bnh", adj, xc @ params["gc1_w"]))
    x0 = jax.nn.relu(jnp.einsum("bnm,bmh->bnh", adj, h1 @ params["gc2_w"]))
    x0f = x0.reshape(x0.shape[0], -1)
    hid = jax.nn.relu(x0f @ params["lin1_w"] + params["lin1_b"])
    logits = hid @ params["lin2_w"] + params["lin2_b"]
    return jax.nn.log_softmax(logits, axis=1), dist_between_cls_ref(x0f, label)


# ---------------------------------------------------------------------------
if __name__ == "__main__":
    # Small shapes consistent with the module.
    B, N_ROI, P, HID, NCLASS = 4, 8, 4, 16, 3
    IN_DIM = 2 * P                  # GCN input dim = concat([x, xs]) feature dim
    FLAT = N_ROI * HID              # 128
    HALF = FLAT // 2                # 64

    key = jax.random.PRNGKey(0)
    ks = jax.random.split(key, 12)

    stdv = 1.0 / jnp.sqrt(float(HID))
    params = {
        "gc1_w": jax.random.uniform(ks[0], (IN_DIM, HID), jnp.float32, -stdv, stdv),
        "gc2_w": jax.random.uniform(ks[1], (HID, HID), jnp.float32, -stdv, stdv),
        # nn.Linear weights stored transposed (in, out) for x @ W
        "lin1_w": jax.random.uniform(ks[2], (FLAT, HALF), jnp.float32,
                                     -1.0 / jnp.sqrt(float(FLAT)), 1.0 / jnp.sqrt(float(FLAT))),
        "lin1_b": jax.random.uniform(ks[3], (HALF,), jnp.float32, -0.1, 0.1),
        "lin2_w": jax.random.uniform(ks[4], (HALF, NCLASS), jnp.float32,
                                     -1.0 / jnp.sqrt(float(HALF)), 1.0 / jnp.sqrt(float(HALF))),
        "lin2_b": jax.random.uniform(ks[5], (NCLASS,), jnp.float32, -0.1, 0.1),
        # trainable scales t: (nclass, adj_dim), uniform(t_init_min, t_init_max)
        "t": jax.random.uniform(ks[6], (NCLASS, N_ROI), jnp.float32, 0.5, 2.0),
    }
    # GraphConvolution defines a bias parameter but never uses it in forward -> omitted.

    x = jax.random.normal(ks[7], (B, N_ROI, P), jnp.float32)
    sym = jax.random.normal(ks[8], (B, N_ROI, N_ROI), jnp.float32)
    adj = 0.5 * (sym + jnp.swapaxes(sym, 1, 2)) / N_ROI
    eigenvalue = jax.random.uniform(ks[9], (B, N_ROI), jnp.float32, 0.0, 2.0)
    eigenvector = jax.random.normal(ks[10], (B, N_ROI, N_ROI), jnp.float32) / jnp.sqrt(float(N_ROI))
    label = jnp.array([0, 1, 2, 1], dtype=jnp.int32)   # 3 unique classes -> dist_loss branch

    log_probs, dist_loss = agt_forward(params, x, adj, eigenvalue, eigenvector, label)
    jax.block_until_ready(log_probs)
    jax.block_until_ready(dist_loss)

    ref_lp, ref_dl = agt_reference(params, x, adj, eigenvalue, eigenvector, label)
    assert jnp.allclose(log_probs, ref_lp, atol=2e-4, rtol=2e-4), "log_softmax mismatch"
    assert jnp.allclose(dist_loss, ref_dl, atol=2e-4, rtol=2e-4), "dist_loss mismatch"

    # TODO(synk): training-mode bookkeeping (rdp/rdp2 dropout masks, activation
    # grad hooks) is gradient plumbing with no inference-path effect; not implemented.
    print("KERNEL_OK")
</pallas_src>

<mosaic_0001>
module attributes {stable_mosaic.version = 11 : i64} {
  func.func @agt_fused_kernel(%arg0: memref<64x32xf32, #tpu.memory_space<vmem>>, %arg1: memref<32x4xf32, #tpu.memory_space<vmem>>, %arg2: memref<1x32xf32, #tpu.memory_space<vmem>>, %arg3: memref<32x16xf32, #tpu.memory_space<vmem>>, %arg4: memref<128x64xf32, #tpu.memory_space<vmem>>, %arg5: memref<64x128xf32, #tpu.memory_space<vmem>>, %arg6: memref<2x128xf32, #tpu.memory_space<vmem>>, %arg7: memref<32x16xf32, #tpu.memory_space<vmem>>, %arg8: memref<4x128xf32, #tpu.memory_space<vmem>>) attributes {dimension_semantics = [], scalar_prefetch = 0 : i64, scratch_operands = 0 : i64, tpu.core_type = #tpu.core_type<tc>} {
    %c0 = arith.constant 0 : index
    %c0_0 = arith.constant 0 : index
    %0 = vector.load %arg0[%c0, %c0_0] : memref<64x32xf32, #tpu.memory_space<vmem>>, vector<32x32xf32>
    %c32 = arith.constant 32 : index
    %c0_1 = arith.constant 0 : index
    %1 = vector.load %arg0[%c32, %c0_1] : memref<64x32xf32, #tpu.memory_space<vmem>>, vector<32x32xf32>
    %c0_2 = arith.constant 0 : index
    %c0_3 = arith.constant 0 : index
    %2 = vector.load %arg1[%c0_2, %c0_3] : memref<32x4xf32, #tpu.memory_space<vmem>>, vector<32x4xf32>
    %c0_4 = arith.constant 0 : index
    %c0_5 = arith.constant 0 : index
    %3 = vector.load %arg2[%c0_4, %c0_5] : memref<1x32xf32, #tpu.memory_space<vmem>>, vector<1x32xf32>
    %4 = math.exp %3 : vector<1x32xf32>
    %5 = vector.broadcast %4 : vector<1x32xf32> to vector<32x32xf32>
    %6 = arith.mulf %0, %5 : vector<32x32xf32>
    %cst = arith.constant dense<0.000000e+00> : vector<32x32xf32>
    %7 = tpu.matmul %6, %0, %cst {dimension_numbers = #tpu.dot_dimension_numbers<[1], [1], [0], [0], [0, 0, 1, 0], [], []>} : vector<32x32xf32>, vector<32x32xf32>, vector<32x32xf32> -> vector<32x32xf32>
    %cst_6 = arith.constant 9.99999974E-6 : f32
    %8 = vector.broadcast %cst_6 : f32 to vector<32x32xf32>
    %9 = arith.cmpf olt, %7, %8 : vector<32x32xf32>
    %cst_7 = arith.constant 0.000000e+00 : f32
    %10 = vector.broadcast %cst_7 : f32 to vector<32x32xf32>
    %11 = arith.select %9, %10, %7 : vector<32x32xi1>, vector<32x32xf32>
    %cst_8 = arith.constant dense<0.000000e+00> : vector<32x4xf32>
    %12 = tpu.matmul %11, %2, %cst_8 {dimension_numbers = #tpu.dot_dimension_numbers<[1], [0], [0], [1], [0, 0, 1, 1], [], []>} : vector<32x32xf32>, vector<32x4xf32>, vector<32x4xf32> -> vector<32x4xf32>
    %c0_9 = arith.constant 0 : index
    %c0_10 = arith.constant 0 : index
    %13 = vector.load %arg3[%c0_9, %c0_10] : memref<32x16xf32, #tpu.memory_space<vmem>>, vector<4x16xf32>
    %c8 = arith.constant 8 : index
    %c0_11 = arith.constant 0 : index
    %14 = vector.load %arg3[%c8, %c0_11] : memref<32x16xf32, #tpu.memory_space<vmem>>, vector<4x16xf32>
    %c16 = arith.constant 16 : index
    %c0_12 = arith.constant 0 : index
    %15 = vector.load %arg3[%c16, %c0_12] : memref<32x16xf32, #tpu.memory_space<vmem>>, vector<16x16xf32>
    %cst_13 = arith.constant dense<0.000000e+00> : vector<32x16xf32>
    %16 = tpu.matmul %2, %13, %cst_13 {dimension_numbers = #tpu.dot_dimension_numbers<[1], [0], [0], [1], [0, 0, 1, 1], [], []>} : vector<32x4xf32>, vector<4x16xf32>, vector<32x16xf32> -> vector<32x16xf32>
    %cst_14 = arith.constant dense<0.000000e+00> : vector<32x16xf32>
    %17 = tpu.matmul %12, %14, %cst_14 {dimension_numbers = #tpu.dot_dimension_numbers<[1], [0], [0], [1], [0, 0, 1, 1], [], []>} : vector<32x4xf32>, vector<4x16xf32>, vector<32x16xf32> -> vector<32x16xf32>
    %18 = arith.addf %16, %17 : vector<32x16xf32>
    %cst_15 = arith.constant dense<0.000000e+00> : vector<32x16xf32>
    %19 = tpu.matmul %1, %18, %cst_15 {dimension_numbers = #tpu.dot_dimension_numbers<[1], [0], [0], [1], [0, 0, 1, 1], [], []>} : vector<32x32xf32>, vector<32x16xf32>, vector<32x16xf32> -> vector<32x16xf32>
    %cst_16 = arith.constant 0.000000e+00 : f32
    %20 = vector.broadcast %cst_16 : f32 to vector<32x16xf32>
    %21 = arith.maximumf %19, %20 : vector<32x16xf32>
    %cst_17 = arith.constant dense<0.000000e+00> : vector<32x16xf32>
    %22 = tpu.matmul %21, %15, %cst_17 {dimension_numbers = #tpu.dot_dimension_numbers<[1], [0], [0], [1], [0, 0, 1, 1], [], []>} : vector<32x16xf32>, vector<16x16xf32>, vector<32x16xf32> -> vector<32x16xf32>
    %cst_18 = arith.constant dense<0.000000e+00> : vector<32x16xf32>
    %23 = tpu.matmul %1, %22, %cst_18 {dimension_numbers = #tpu.dot_dimension_numbers<[1], [0], [0], [1], [0, 0, 1, 1], [], []>} : vector<32x32xf32>, vector<32x16xf32>, vector<32x16xf32> -> vector<32x16xf32>
    %cst_19 = arith.constant 0.000000e+00 : f32
    %24 = vector.broadcast %cst_19 : f32 to vector<32x16xf32>
    %25 = arith.maximumf %23, %24 : vector<32x16xf32>
    %c0_20 = arith.constant 0 : index
    %c0_21 = arith.constant 0 : index
    %26 = vector.load %arg7[%c0_20, %c0_21] : memref<32x16xf32, #tpu.memory_space<vmem>>, vector<32x16xf32>
    tpu.vector_store %arg7[%c0_20, %c0_21], %25 {strides = array<i32>} : memref<32x16xf32, #tpu.memory_space<vmem>>, vector<32x16xf32>,
    %c0_22 = arith.constant 0 : index
    %c0_23 = arith.constant 0 : index
    %27 = vector.load %arg4[%c0_22, %c0_23] : memref<128x64xf32, #tpu.memory_space<vmem>>, vector<128x64xf32>
    %c0_24 = arith.constant 0 : index
    %c0_25 = arith.constant 0 : index
    %28 = vector.load %arg6[%c0_24, %c0_25] : memref<2x128xf32, #tpu.memory_space<vmem>>, vector<1x64xf32>
    %cst_26 = arith.constant 0.000000e+00 : f32
    %29 = vector.broadcast %cst_26 : f32 to vector<4x64xf32>
    %30 = vector.broadcast %28 : vector<1x64xf32> to vector<4x64xf32>
    %31 = arith.addf %29, %30 : vector<4x64xf32>
    %32 = vector.extract_strided_slice %25 {offsets = [0, 0], sizes = [4, 16], strides = [1, 1]} : vector<32x16xf32> to vector<4x16xf32>
    %33 = vector.extract_strided_slice %27 {offsets = [0, 0], sizes = [16, 64], strides = [1, 1]} : vector<128x64xf32> to vector<16x64xf32>
    %cst_27 = arith.constant dense<0.000000e+00> : vector<4x64xf32>
    %34 = tpu.matmul %32, %33, %cst_27 {dimension_numbers = #tpu.dot_dimension_numbers<[1], [0], [0], [1], [0, 0, 1, 1], [], []>} : vector<4x16xf32>, vector<16x64xf32>, vector<4x64xf32> -> vector<4x64xf32>
    %35 = arith.addf %31, %34 : vector<4x64xf32>
    %36 = vector.extract_strided_slice %25 {offsets = [4, 0], sizes = [4, 16], strides = [1, 1]} : vector<32x16xf32> to vector<4x16xf32>
    %37 = vector.extract_strided_slice %27 {offsets = [16, 0], sizes = [16, 64], strides = [1, 1]} : vector<128x64xf32> to vector<16x64xf32>
    %cst_28 = arith.constant dense<0.000000e+00> : vector<4x64xf32>
    %38 = tpu.matmul %36, %37, %cst_28 {dimension_numbers = #tpu.dot_dimension_numbers<[1], [0], [0], [1], [0, 0, 1, 1], [], []>} : vector<4x16xf32>, vector<16x64xf32>, vector<4x64xf32> -> vector<4x64xf32>
    %39 = arith.addf %35, %38 : vector<4x64xf32>
    %40 = vector.extract_strided_slice %25 {offsets = [8, 0], sizes = [4, 16], strides = [1, 1]} : vector<32x16xf32> to vector<4x16xf32>
    %41 = vector.extract_strided_slice %27 {offsets = [32, 0], sizes = [16, 64], strides = [1, 1]} : vector<128x64xf32> to vector<16x64xf32>
    %cst_29 = arith.constant dense<0.000000e+00> : vector<4x64xf32>
    %42 = tpu.matmul %40, %41, %cst_29 {dimension_numbers = #tpu.dot_dimension_numbers<[1], [0], [0], [1], [0, 0, 1, 1], [], []>} : vector<4x16xf32>, vector<16x64xf32>, vector<4x64xf32> -> vector<4x64xf32>
    %43 = arith.addf %39, %42 : vector<4x64xf32>
    %44 = vector.extract_strided_slice %25 {offsets = [12, 0], sizes = [4, 16], strides = [1, 1]} : vector<32x16xf32> to vector<4x16xf32>
    %45 = vector.extract_strided_slice %27 {offsets = [48, 0], sizes = [16, 64], strides = [1, 1]} : vector<128x64xf32> to vector<16x64xf32>
    %cst_30 = arith.constant dense<0.000000e+00> : vector<4x64xf32>
    %46 = tpu.matmul %44, %45, %cst_30 {dimension_numbers = #tpu.dot_dimension_numbers<[1], [0], [0], [1], [0, 0, 1, 1], [], []>} : vector<4x16xf32>, vector<16x64xf32>, vector<4x64xf32> -> vector<4x64xf32>
    %47 = arith.addf %43, %46 : vector<4x64xf32>
    %48 = vector.extract_strided_slice %25 {offsets = [16, 0], sizes = [4, 16], strides = [1, 1]} : vector<32x16xf32> to vector<4x16xf32>
    %49 = vector.extract_strided_slice %27 {offsets = [64, 0], sizes = [16, 64], strides = [1, 1]} : vector<128x64xf32> to vector<16x64xf32>
    %cst_31 = arith.constant dense<0.000000e+00> : vector<4x64xf32>
    %50 = tpu.matmul %48, %49, %cst_31 {dimension_numbers = #tpu.dot_dimension_numbers<[1], [0], [0], [1], [0, 0, 1, 1], [], []>} : vector<4x16xf32>, vector<16x64xf32>, vector<4x64xf32> -> vector<4x64xf32>
    %51 = arith.addf %47, %50 : vector<4x64xf32>
    %52 = vector.extract_strided_slice %25 {offsets = [20, 0], sizes = [4, 16], strides = [1, 1]} : vector<32x16xf32> to vector<4x16xf32>
    %53 = vector.extract_strided_slice %27 {offsets = [80, 0], sizes = [16, 64], strides = [1, 1]} : vector<128x64xf32> to vector<16x64xf32>
    %cst_32 = arith.constant dense<0.000000e+00> : vector<4x64xf32>
    %54 = tpu.matmul %52, %53, %cst_32 {dimension_numbers = #tpu.dot_dimension_numbers<[1], [0], [0], [1], [0, 0, 1, 1], [], []>} : vector<4x16xf32>, vector<16x64xf32>, vector<4x64xf32> -> vector<4x64xf32>
    %55 = arith.addf %51, %54 : vector<4x64xf32>
    %56 = vector.extract_strided_slice %25 {offsets = [24, 0], sizes = [4, 16], strides = [1, 1]} : vector<32x16xf32> to vector<4x16xf32>
    %57 = vector.extract_strided_slice %27 {offsets = [96, 0], sizes = [16, 64], strides = [1, 1]} : vector<128x64xf32> to vector<16x64xf32>
    %cst_33 = arith.constant dense<0.000000e+00> : vector<4x64xf32>
    %58 = tpu.matmul %56, %57, %cst_33 {dimension_numbers = #tpu.dot_dimension_numbers<[1], [0], [0], [1], [0, 0, 1, 1], [], []>} : vector<4x16xf32>, vector<16x64xf32>, vector<4x64xf32> -> vector<4x64xf32>
    %59 = arith.addf %55, %58 : vector<4x64xf32>
    %60 = vector.extract_strided_slice %25 {offsets = [28, 0], sizes = [4, 16], strides = [1, 1]} : vector<32x16xf32> to vector<4x16xf32>
    %61 = vector.extract_strided_slice %27 {offsets = [112, 0], sizes = [16, 64], strides = [1, 1]} : vector<128x64xf32> to vector<16x64xf32>
    %cst_34 = arith.constant dense<0.000000e+00> : vector<4x64xf32>
    %62 = tpu.matmul %60, %61, %cst_34 {dimension_numbers = #tpu.dot_dimension_numbers<[1], [0], [0], [1], [0, 0, 1, 1], [], []>} : vector<4x16xf32>, vector<16x64xf32>, vector<4x64xf32> -> vector<4x64xf32>
    %63 = arith.addf %59, %62 : vector<4x64xf32>
    %cst_35 = arith.constant 0.000000e+00 : f32
    %64 = vector.broadcast %cst_35 : f32 to vector<4x64xf32>
    %65 = arith.maximumf %63, %64 : vector<4x64xf32>
    %c1 = arith.constant 1 : index
    %c0_36 = arith.constant 0 : index
    %66 = vector.load %arg6[%c1, %c0_36] : memref<2x128xf32, #tpu.memory_space<vmem>>, vector<1x128xf32>
    %c0_37 = arith.constant 0 : index
    %c0_38 = arith.constant 0 : index
    %67 = vector.load %arg5[%c0_37, %c0_38] : memref<64x128xf32, #tpu.memory_space<vmem>>, vector<64x128xf32>
    %cst_39 = arith.constant dense<0.000000e+00> : vector<4x128xf32>
    %68 = tpu.matmul %65, %67, %cst_39 {dimension_numbers = #tpu.dot_dimension_numbers<[1], [0], [0], [1], [0, 0, 1, 1], [], []>} : vector<4x64xf32>, vector<64x128xf32>, vector<4x128xf32> -> vector<4x128xf32>
    %69 = vector.broadcast %66 : vector<1x128xf32> to vector<4x128xf32>
    %70 = arith.addf %68, %69 : vector<4x128xf32>
    %cst_40 = arith.constant dense<0xFF800000> : vector<4xf32>
    %71 = vector.multi_reduction <maximumf>, %70, %cst_40 [1] : vector<4x128xf32> to vector<4xf32>
    %72 = vector.shape_cast %71 : vector<4xf32> to vector<4x1xf32>
    %73 = vector.broadcast %72 : vector<4x1xf32> to vector<4x128xf32>
    %74 = arith.subf %70, %73 : vector<4x128xf32>
    %75 = math.exp %74 : vector<4x128xf32>
    %cst_41 = arith.constant dense<0.000000e+00> : vector<4xf32>
    %76 = vector.multi_reduction <add>, %75, %cst_41 [1] : vector<4x128xf32> to vector<4xf32>
    %77 = vector.shape_cast %76 : vector<4xf32> to vector<4x1xf32>
    %78 = math.log %77 : vector<4x1xf32>
    %79 = vector.broadcast %78 : vector<4x1xf32> to vector<4x128xf32>
    %80 = arith.subf %74, %79 : vector<4x128xf32>
    %c0_42 = arith.constant 0 : index
    %c0_43 = arith.constant 0 : index
    %81 = vector.load %arg8[%c0_42, %c0_43] : memref<4x128xf32, #tpu.memory_space<vmem>>, vector<4x128xf32>
    tpu.vector_store %arg8[%c0_42, %c0_43], %80 {strides = array<i32>} : memref<4x128xf32, #tpu.memory_space<vmem>>, vector<4x128xf32>,
    return
  }
}

</mosaic_0001>

<llo_original>
// kernel: agt_forward.1
$region0: #{agt_forward.1}
  #allocation0 [shape = 'u32[]', space=smem, size = 0x4, offset = 0x4, fixed_abs, tag = 'smem constant byte address 0x4 - core index']
  #allocation1 [shape = 'u32[72,128]{1,0:T(1,128)}', space=vmem, size = 0x9000, scoped, tag = 'internal scratch']
  %s0 = inlined_call_operand.vmem [shape: f32[64,32], index: 0, kind: input, shape index: {}]
  %s1 = inlined_call_operand.vmem [shape: f32[32,4], index: 1, kind: input, shape index: {}]
  %s2 = inlined_call_operand.vmem [shape: f32[1,32], index: 2, kind: input, shape index: {}]
  %s3 = inlined_call_operand.vmem [shape: f32[32,16], index: 3, kind: input, shape index: {}]
  %s4 = inlined_call_operand.vmem [shape: f32[128,64], index: 4, kind: input, shape index: {}]
  %s5 = inlined_call_operand.vmem [shape: f32[64,128], index: 5, kind: input, shape index: {}]
  %s6 = inlined_call_operand.vmem [shape: f32[2,128], index: 6, kind: input, shape index: {}]
  %s7 = inlined_call_operand.vmem [shape: f32[32,16], index: 7, kind: output, shape index: {0}]
  %s8 = inlined_call_operand.hbm [shape: f32[4,128], index: 8, kind: output, shape index: {1}]
  %9 = xla_tuple %s7, %s8
  %s10 = sld [smem:[#allocation0]]
  $region46: #{agt_forward.1} parent=0
    _
  %s12 = ssub.s32 1, %s10
  %s13 = scalar_select 0, %s12, %s10
  $region1: #{agt_forward.1} parent=0
    #allocation2 [shape = 'u8[2048]{0}', space=vmem, size = 0x800, scoped, tag = 'output window, operand 1, single buffered']
    #allocation3 [shape = 's32[1]{0}', space=sflag, size = 0x4, scoped, tag = 'scoped memory for agt_forward.1']
    %14 = vsyncpa [#allocation3], 0
    // Predicated region
    $region2: #{agt_forward.1} parent=1 // pred_check
      _
    $region3: #{agt_forward.1} parent=1 // pred_check_branch
      %16 = sbr.rel (0) target = $region5
    $region4: #{agt_forward.1} parent=1 // pred_region
      _
    $region5: #{agt_forward.1} parent=1 // pred_fallthru
      _
    // Predicated region
    $region6: #{agt_forward.1} parent=1 // pred_check
      _
    $region7: #{agt_forward.1} parent=1 // pred_check_branch
      %18 = sbr.rel (0) target = $region9
    $region8: #{agt_forward.1} parent=1 // pred_region
      _
    $region9: #{agt_forward.1} parent=1 // pred_fallthru
      _
    // Predicated region
    $region10: #{agt_forward.1} parent=1 // pred_check
      _
    $region11: #{agt_forward.1} parent=1 // pred_check_branch
      %20 = sbr.rel (0) target = $region13
    $region12: #{agt_forward.1} parent=1 // pred_region
      _
    $region13: #{agt_forward.1} parent=1 // pred_fallthru
      _
    // Predicated region
    $region14: #{agt_forward.1} parent=1 // pred_check
      _
    $region15: #{agt_forward.1} parent=1 // pred_check_branch
      %22 = sbr.rel (0) target = $region17
    $region16: #{agt_forward.1} parent=1 // pred_region
      _
    $region17: #{agt_forward.1} parent=1 // pred_fallthru
      _
    // Predicated region
    $region18: #{agt_forward.1} parent=1 // pred_check
      _
    $region19: #{agt_forward.1} parent=1 // pred_check_branch
      %24 = sbr.rel (0) target = $region21
    $region20: #{agt_forward.1} parent=1 // pred_region
      _
    $region21: #{agt_forward.1} parent=1 // pred_fallthru
      _
    // Predicated region
    $region22: #{agt_forward.1} parent=1 // pred_check
      _
    $region23: #{agt_forward.1} parent=1 // pred_check_branch
      %26 = sbr.rel (0) target = $region25
    $region24: #{agt_forward.1} parent=1 // pred_region
      _
    $region25: #{agt_forward.1} parent=1 // pred_fallthru
      _
    // Predicated region
    $region26: #{agt_forward.1} parent=1 // pred_check
      _
    $region27: #{agt_forward.1} parent=1 // pred_check_branch
      %28 = sbr.rel (0) target = $region29
    $region28: #{agt_forward.1} parent=1 // pred_region
      _
    $region29: #{agt_forward.1} parent=1 // pred_fallthru
      _
    %v29 = vld [vmem:[%s0] sm:$0xff]
    %v30 = vld [vmem:[%s0 + $0x8] sm:$0xff]
    %v31 = vld [vmem:[%s0 + $0x10] sm:$0xff]
    %v32 = vld [vmem:[%s0 + $0x18] sm:$0xff]
    %v33 = vld [vmem:[%s0 + $0x20] sm:$0xff]
    %v34 = vld [vmem:[%s0 + $0x28] sm:$0xff]
    %v35 = vld [vmem:[%s0 + $0x30] sm:$0xff]
    %v36 = vld [vmem:[%s0 + $0x38] sm:$0xff]
    %v37 = vld [vmem:[%s1] sm:$0xff]
    %v38 = vld [vmem:[%s1 + $0x8] sm:$0xff]
    %v39 = vld [vmem:[%s1 + $0x10] sm:$0xff]
    %v40 = vld [vmem:[%s1 + $0x18] sm:$0xff]
    %v41 = vld [vmem:[%s2] sm:$0x1]
    %v42 = vmul.f32 %v41, 1.442695
    %v43 = vpow.pop %v42
    %v45 = vperm.slane %v43, 0
    %v47 = vmul.f32 %v29, %v45
    %v48 = vmul.f32 %v30, %v45
    %v49 = vmul.f32 %v31, %v45
    %v50 = vmul.f32 %v32, %v45
    %vm51 = vcmask 261120
    %v53 = vsel %vm51, %v47, 0
    %v56 = vsel %vm51, %v48, 0
    %v59 = vsel %vm51, %v49, 0
    %v62 = vsel %vm51, %v50, 0
    %v65 = vsel %vm51, %v29, 0
    %v68 = vsel %vm51, %v30, 0
    %v71 = vsel %vm51, %v31, 0
    %v74 = vsel %vm51, %v32, 0
    %76 = vmatpush.xpose.msra.mxu0 0.0
    %77 = vmatpush.xpose.msra.mxu0 0.0
    %78 = vmatpush.xpose.msra.mxu0 0.0
    %79 = vmatpush.xpose.msra.mxu0 0.0
    %80 = vmatpush.xpose.msra.mxu0 0.0
    %81 = vmatpush.xpose.msra.mxu0 0.0
    %82 = vmatpush.xpose.msra.mxu0 0.0
    %83 = vmatpush.xpose.msra.mxu0 0.0
    %84 = vmatpush.xpose.msra.mxu0 0.0
    %85 = vmatpush.xpose.msra.mxu0 0.0
    %86 = vmatpush.xpose.msra.mxu0 0.0
    %87 = vmatpush.xpose.msra.mxu0 0.0
    %88 = vmatpush.xpose.msra.mxu0 %v74
    %89 = vmatpush.xpose.msra.mxu0 %v71
    %90 = vmatpush.xpose.msra.mxu0 %v68
    %91 = vmatpush.xpose.msra.mxu0 %v65
    %92 = vmatmul.f32.gmra.mxu0 %v53
    %v93 = vpop.f32.mrf.mxu0
    %v94 = vadd.f32 0.0, %v93
    %95 = vmatmul.f32.gmra.mxu0 %v56
    %v96 = vpop.f32.mrf.mxu0
    %v97 = vadd.f32 0.0, %v96
    %98 = vmatmul.f32.gmra.mxu0 %v59
    %v99 = vpop.f32.mrf.mxu0
    %v100 = vadd.f32 0.0, %v99
    %101 = vmatmul.f32.gmra.mxu0 %v62
    %v102 = vpop.f32.mrf.mxu0
    %v103 = vadd.f32 0.0, %v102
    %104 = vdwg.mxu0
    %vm105 = vcmp.lt.f32.partialorder %v94, 1e-05
    %vm106 = vcmp.lt.f32.partialorder %v97, 1e-05
    %vm107 = vcmp.lt.f32.partialorder %v100, 1e-05
    %vm108 = vcmp.lt.f32.partialorder %v103, 1e-05
    %v109 = vsel %vm105, 0.0, %v94
    %v110 = vsel %vm106, 0.0, %v97
    %v111 = vsel %vm107, 0.0, %v100
    %v112 = vsel %vm108, 0.0, %v103
    %v114 = vsel %vm51, %v109, 0
    %v117 = vsel %vm51, %v110, 0
    %v120 = vsel %vm51, %v111, 0
    %v123 = vsel %vm51, %v112, 0
    %125 = vmatpush.msra.mxu0 0.0
    %126 = vmatpush.msra.mxu0 0.0
    %127 = vmatpush.msra.mxu0 0.0
    %128 = vmatpush.msra.mxu0 0.0
    %129 = vmatpush.msra.mxu0 0.0
    %130 = vmatpush.msra.mxu0 0.0
    %131 = vmatpush.msra.mxu0 0.0
    %132 = vmatpush.msra.mxu0 0.0
    %133 = vmatpush.msra.mxu0 0.0
    %134 = vmatpush.msra.mxu0 0.0
    %135 = vmatpush.msra.mxu0 0.0
    %136 = vmatpush.msra.mxu0 0.0
    %137 = vmatpush.msra.mxu0 %v40
    %138 = vmatpush.msra.mxu0 %v39
    %139 = vmatpush.msra.mxu0 %v38
    %140 = vmatpush.msra.mxu0 %v37
    %141 = vmatmul.f32.gmra.mxu0 %v114
    %v142 = vpop.f32.mrf.mxu0
    %v143 = vadd.f32 0.0, %v142
    %144 = vmatmul.f32.gmra.mxu0 %v117
    %v145 = vpop.f32.mrf.mxu0
    %v146 = vadd.f32 0.0, %v145
    %147 = vmatmul.f32.gmra.mxu0 %v120
    %v148 = vpop.f32.mrf.mxu0
    %v149 = vadd.f32 0.0, %v148
    %150 = vmatmul.f32.gmra.mxu0 %v123
    %v151 = vpop.f32.mrf.mxu0
    %v152 = vadd.f32 0.0, %v151
    %153 = vdwg.mxu0
    %v154 = vld [vmem:[%s3] sm:$0xf]
    %v155 = vld [vmem:[%s3 + $0x8] sm:$0xf]
    %v156 = vld [vmem:[%s3 + $0x10] sm:$0xff]
    %v157 = vld [vmem:[%s3 + $0x18] sm:$0xff]
    %vm158 = vcmask 31744
    %v160 = vsel %vm158, %v143, 0
    %v163 = vsel %vm158, %v146, 0
    %v166 = vsel %vm158, %v149, 0
    %v169 = vsel %vm158, %v152, 0
    %vm171 = vcmask 1043456
    %v173 = vsel %vm171, %v155, 0
    %175 = vmatpush.msra.mxu0 0.0
    %176 = vmatpush.msra.mxu0 0.0
    %177 = vmatpush.msra.mxu0 0.0
    %178 = vmatpush.msra.mxu0 0.0
    %179 = vmatpush.msra.mxu0 0.0
    %180 = vmatpush.msra.mxu0 0.0
    %181 = vmatpush.msra.mxu0 0.0
    %182 = vmatpush.msra.mxu0 0.0
    %183 = vmatpush.msra.mxu0 0.0
    %184 = vmatpush.msra.mxu0 0.0
    %185 = vmatpush.msra.mxu0 0.0
    %186 = vmatpush.msra.mxu0 0.0
    %187 = vmatpush.msra.mxu0 0.0
    %188 = vmatpush.msra.mxu0 0.0
    %189 = vmatpush.msra.mxu0 0.0
    %190 = vmatpush.msra.mxu0 %v173
    %191 = vmatmul.f32.gmra.mxu0 %v160
    %v192 = vpop.f32.mrf.mxu0
    %v193 = vadd.f32 0.0, %v192
    %194 = vmatmul.f32.gmra.mxu0 %v163
    %v195 = vpop.f32.mrf.mxu0
    %v196 = vadd.f32 0.0, %v195
    %197 = vmatmul.f32.gmra.mxu0 %v166
    %v198 = vpop.f32.mrf.mxu0
    %v199 = vadd.f32 0.0, %v198
    %200 = vmatmul.f32.gmra.mxu0 %v169
    %v201 = vpop.f32.mrf.mxu0
    %v202 = vadd.f32 0.0, %v201
    %203 = vdwg.mxu0
    %v205 = vsel %vm158, %v37, 0
    %v208 = vsel %vm158, %v38, 0
    %v211 = vsel %vm158, %v39, 0
    %v214 = vsel %vm158, %v40, 0
    %v217 = vsel %vm171, %v154, 0
    %219 = vmatpush.msra.mxu0 0.0
    %220 = vmatpush.msra.mxu0 0.0
    %221 = vmatpush.msra.mxu0 0.0
    %222 = vmatpush.msra.mxu0 0.0
    %223 = vmatpush.msra.mxu0 0.0
    %224 = vmatpush.msra.mxu0 0.0
    %225 = vmatpush.msra.mxu0 0.0
    %226 = vmatpush.msra.mxu0 0.0
    %227 = vmatpush.msra.mxu0 0.0
    %228 = vmatpush.msra.mxu0 0.0
    %229 = vmatpush.msra.mxu0 0.0
    %230 = vmatpush.msra.mxu0 0.0
    %231 = vmatpush.msra.mxu0 0.0
    %232 = vmatpush.msra.mxu0 0.0
    %233 = vmatpush.msra.mxu0 0.0
    %234 = vmatpush.msra.mxu0 %v217
    %235 = vmatmul.f32.gmra.mxu0 %v205
    %v236 = vpop.f32.mrf.mxu0
    %v237 = vadd.f32 %v193, %v236
    %238 = vmatmul.f32.gmra.mxu0 %v208
    %v239 = vpop.f32.mrf.mxu0
    %v240 = vadd.f32 %v196, %v239
    %241 = vmatmul.f32.gmra.mxu0 %v211
    %v242 = vpop.f32.mrf.mxu0
    %v243 = vadd.f32 %v199, %v242
    %244 = vmatmul.f32.gmra.mxu0 %v214
    %v245 = vpop.f32.mrf.mxu0
    %v246 = vadd.f32 %v202, %v245
    %247 = vdwg.mxu0
    %v249 = vsel %vm51, %v33, 0
    %v252 = vsel %vm51, %v34, 0
    %v255 = vsel %vm51, %v35, 0
    %v258 = vsel %vm51, %v36, 0
    %260 = vmatpush.msra.mxu0 0.0
    %261 = vmatpush.msra.mxu0 0.0
    %262 = vmatpush.msra.mxu0 0.0
    %263 = vmatpush.msra.mxu0 0.0
    %264 = vmatpush.msra.mxu0 0.0
    %265 = vmatpush.msra.mxu0 0.0
    %266 = vmatpush.msra.mxu0 0.0
    %267 = vmatpush.msra.mxu0 0.0
    %268 = vmatpush.msra.mxu0 0.0
    %269 = vmatpush.msra.mxu0 0.0
    %270 = vmatpush.msra.mxu0 0.0
    %271 = vmatpush.msra.mxu0 0.0
    %272 = vmatpush.msra.mxu0 %v246
    %273 = vmatpush.msra.mxu0 %v243
    %274 = vmatpush.msra.mxu0 %v240
    %275 = vmatpush.msra.mxu0 %v237
    %276 = vmatmul.f32.gmra.mxu0 %v249
    %v277 = vpop.f32.mrf.mxu0
    %v278 = vadd.f32 0.0, %v277
    %279 = vmatmul.f32.gmra.mxu0 %v252
    %v280 = vpop.f32.mrf.mxu0
    %v281 = vadd.f32 0.0, %v280
    %282 = vmatmul.f32.gmra.mxu0 %v255
    %v283 = vpop.f32.mrf.mxu0
    %v284 = vadd.f32 0.0, %v283
    %285 = vmatmul.f32.gmra.mxu0 %v258
    %v286 = vpop.f32.mrf.mxu0
    %v287 = vadd.f32 0.0, %v286
    %288 = vdwg.mxu0
    %v289 = vmax.f32 %v278, 0.0
    %v290 = vmax.f32 %v281, 0.0
    %v291 = vmax.f32 %v284, 0.0
    %v292 = vmax.f32 %v287, 0.0
    %vm293 = vcmask 130048
    %v295 = vsel %vm293, %v289, 0
    %v298 = vsel %vm293, %v290, 0
    %v301 = vsel %vm293, %v291, 0
    %v304 = vsel %vm293, %v292, 0
    %306 = vmatpush.msra.mxu0 0.0
    %307 = vmatpush.msra.mxu0 0.0
    %308 = vmatpush.msra.mxu0 0.0
    %309 = vmatpush.msra.mxu0 0.0
    %310 = vmatpush.msra.mxu0 0.0
    %311 = vmatpush.msra.mxu0 0.0
    %312 = vmatpush.msra.mxu0 0.0
    %313 = vmatpush.msra.mxu0 0.0
    %314 = vmatpush.msra.mxu0 0.0
    %315 = vmatpush.msra.mxu0 0.0
    %316 = vmatpush.msra.mxu0 0.0
    %317 = vmatpush.msra.mxu0 0.0
    %318 = vmatpush.msra.mxu0 0.0
    %319 = vmatpush.msra.mxu0 0.0
    %320 = vmatpush.msra.mxu0 %v157
    %321 = vmatpush.msra.mxu0 %v156
    %322 = vmatmul.f32.gmra.mxu0 %v295
    %v323 = vpop.f32.mrf.mxu0
    %v324 = vadd.f32 0.0, %v323
    %325 = vmatmul.f32.gmra.mxu0 %v298
    %v326 = vpop.f32.mrf.mxu0
    %v327 = vadd.f32 0.0, %v326
    %328 = vmatmul.f32.gmra.mxu0 %v301
    %v329 = vpop.f32.mrf.mxu0
    %v330 = vadd.f32 0.0, %v329
    %331 = vmatmul.f32.gmra.mxu0 %v304
    %v332 = vpop.f32.mrf.mxu0
    %v333 = vadd.f32 0.0, %v332
    %334 = vdwg.mxu0
    %335 = vmatpush.msra.mxu0 0.0
    %336 = vmatpush.msra.mxu0 0.0
    %337 = vmatpush.msra.mxu0 0.0
    %338 = vmatpush.msra.mxu0 0.0
    %339 = vmatpush.msra.mxu0 0.0
    %340 = vmatpush.msra.mxu0 0.0
    %341 = vmatpush.msra.mxu0 0.0
    %342 = vmatpush.msra.mxu0 0.0
    %343 = vmatpush.msra.mxu0 0.0
    %344 = vmatpush.msra.mxu0 0.0
    %345 = vmatpush.msra.mxu0 0.0
    %346 = vmatpush.msra.mxu0 0.0
    %347 = vmatpush.msra.mxu0 %v333
    %348 = vmatpush.msra.mxu0 %v330
    %349 = vmatpush.msra.mxu0 %v327
    %350 = vmatpush.msra.mxu0 %v324
    %351 = vmatmul.f32.gmra.mxu0 %v249
    %v352 = vpop.f32.mrf.mxu0
    %v353 = vadd.f32 0.0, %v352
    %354 = vmatmul.f32.gmra.mxu0 %v252
    %v355 = vpop.f32.mrf.mxu0
    %v356 = vadd.f32 0.0, %v355
    %357 = vmatmul.f32.gmra.mxu0 %v255
    %v358 = vpop.f32.mrf.mxu0
    %v359 = vadd.f32 0.0, %v358
    %360 = vmatmul.f32.gmra.mxu0 %v258
    %v361 = vpop.f32.mrf.mxu0
    %v362 = vadd.f32 0.0, %v361
    %363 = vdwg.mxu0
    %v364 = vmax.f32 %v353, 0.0
    %v365 = vmax.f32 %v356, 0.0
    %v366 = vmax.f32 %v359, 0.0
    %v367 = vmax.f32 %v362, 0.0
    %368 = vst.msk [vmem:[%s7] sm:$0xff] %vm293, %v364
    %369 = vst.msk [vmem:[%s7 + $0x8] sm:$0xff] %vm293, %v365
    %370 = vst.msk [vmem:[%s7 + $0x10] sm:$0xff] %vm293, %v366
    %371 = vst.msk [vmem:[%s7 + $0x18] sm:$0xff] %vm293, %v367
    %v372 = vld [vmem:[%s4] sm:$0xff]
    %v373 = vld [vmem:[%s4 + $0x8] sm:$0xff]
    %v374 = vld [vmem:[%s4 + $0x10] sm:$0xff]
    %v375 = vld [vmem:[%s4 + $0x18] sm:$0xff]
    %v376 = vld [vmem:[%s4 + $0x20] sm:$0xff]
    %v377 = vld [vmem:[%s4 + $0x28] sm:$0xff]
    %v378 = vld [vmem:[%s4 + $0x30] sm:$0xff]
    %v379 = vld [vmem:[%s4 + $0x38] sm:$0xff]
    %v380 = vld [vmem:[%s4 + $0x40] sm:$0xff]
    %v381 = vld [vmem:[%s4 + $0x48] sm:$0xff]
    %v382 = vld [vmem:[%s4 + $0x50] sm:$0xff]
    %v383 = vld [vmem:[%s4 + $0x58] sm:$0xff]
    %v384 = vld [vmem:[%s4 + $0x60] sm:$0xff]
    %v385 = vld [vmem:[%s4 + $0x68] sm:$0xff]
    %v386 = vld [vmem:[%s4 + $0x70] sm:$0xff]
    %v387 = vld [vmem:[%s4 + $0x78] sm:$0xff]
    %v388 = vld [vmem:[%s6] sm:$0x1]
    %v389 = vperm.slane %v388, 0
    %v390 = vadd.f32 %v389, 0.0
    %v392 = vsel %vm293, %v364, 0
    %394 = vmatpush.msra.mxu0 0.0
    %395 = vmatpush.msra.mxu0 0.0
    %396 = vmatpush.msra.mxu0 0.0
    %397 = vmatpush.msra.mxu0 0.0
    %398 = vmatpush.msra.mxu0 0.0
    %399 = vmatpush.msra.mxu0 0.0
    %400 = vmatpush.msra.mxu0 0.0
    %401 = vmatpush.msra.mxu0 0.0
    %402 = vmatpush.msra.mxu0 0.0
    %403 = vmatpush.msra.mxu0 0.0
    %404 = vmatpush.msra.mxu0 0.0
    %405 = vmatpush.msra.mxu0 0.0
    %406 = vmatpush.msra.mxu0 0.0
    %407 = vmatpush.msra.mxu0 0.0
    %408 = vmatpush.msra.mxu0 %v373
    %409 = vmatpush.msra.mxu0 %v372
    %410 = vmatmul.f32.gmra.mxu0 %v392
    %v411 = vpop.f32.mrf.mxu0
    %v412 = vadd.f32 0.0, %v411
    %413 = vdwg.mxu0
    %v414 = vadd.f32 %v390, %v412
    %v415 = vrot.slane %v364, 4
    %v416 = vsel %vm293, %v415, 0
    %418 = vmatpush.msra.mxu0 0.0
    %419 = vmatpush.msra.mxu0 0.0
    %420 = vmatpush.msra.mxu0 0.0
    %421 = vmatpush.msra.mxu0 0.0
    %422 = vmatpush.msra.mxu0 0.0
    %423 = vmatpush.msra.mxu0 0.0
    %424 = vmatpush.msra.mxu0 0.0
    %425 = vmatpush.msra.mxu0 0.0
    %426 = vmatpush.msra.mxu0 0.0
    %427 = vmatpush.msra.mxu0 0.0
    %428 = vmatpush.msra.mxu0 0.0
    %429 = vmatpush.msra.mxu0 0.0
    %430 = vmatpush.msra.mxu0 0.0
    %431 = vmatpush.msra.mxu0 0.0
    %432 = vmatpush.msra.mxu0 %v375
    %433 = vmatpush.msra.mxu0 %v374
    %434 = vmatmul.f32.gmra.mxu0 %v416
    %v435 = vpop.f32.mrf.mxu0
    %v436 = vadd.f32 0.0, %v435
    %437 = vdwg.mxu0
    %v438 = vadd.f32 %v414, %v436
    %v440 = vsel %vm293, %v365, 0
    %442 = vmatpush.msra.mxu0 0.0
    %443 = vmatpush.msra.mxu0 0.0
    %444 = vmatpush.msra.mxu0 0.0
    %445 = vmatpush.msra.mxu0 0.0
    %446 = vmatpush.msra.mxu0 0.0
    %447 = vmatpush.msra.mxu0 0.0
    %448 = vmatpush.msra.mxu0 0.0
    %449 = vmatpush.msra.mxu0 0.0
    %450 = vmatpush.msra.mxu0 0.0
    %451 = vmatpush.msra.mxu0 0.0
    %452 = vmatpush.msra.mxu0 0.0
    %453 = vmatpush.msra.mxu0 0.0
    %454 = vmatpush.msra.mxu0 0.0
    %455 = vmatpush.msra.mxu0 0.0
    %456 = vmatpush.msra.mxu0 %v377
    %457 = vmatpush.msra.mxu0 %v376
    %458 = vmatmul.f32.gmra.mxu0 %v440
    %v459 = vpop.f32.mrf.mxu0
    %v460 = vadd.f32 0.0, %v459
    %461 = vdwg.mxu0
    %v462 = vadd.f32 %v438, %v460
    %v463 = vrot.slane %v365, 4
    %v464 = vsel %vm293, %v463, 0
    %466 = vmatpush.msra.mxu0 0.0
    %467 = vmatpush.msra.mxu0 0.0
    %468 = vmatpush.msra.mxu0 0.0
    %469 = vmatpush.msra.mxu0 0.0
    %470 = vmatpush.msra.mxu0 0.0
    %471 = vmatpush.msra.mxu0 0.0
    %472 = vmatpush.msra.mxu0 0.0
    %473 = vmatpush.msra.mxu0 0.0
    %474 = vmatpush.msra.mxu0 0.0
    %475 = vmatpush.msra.mxu0 0.0
    %476 = vmatpush.msra.mxu0 0.0
    %477 = vmatpush.msra.mxu0 0.0
    %478 = vmatpush.msra.mxu0 0.0
    %479 = vmatpush.msra.mxu0 0.0
    %480 = vmatpush.msra.mxu0 %v379
    %481 = vmatpush.msra.mxu0 %v378
    %482 = vmatmul.f32.gmra.mxu0 %v464
    %v483 = vpop.f32.mrf.mxu0
    %v484 = vadd.f32 0.0, %v483
    %485 = vdwg.mxu0
    %v486 = vadd.f32 %v462, %v484
    %v488 = vsel %vm293, %v366, 0
    %490 = vmatpush.msra.mxu0 0.0
    %491 = vmatpush.msra.mxu0 0.0
    %492 = vmatpush.msra.mxu0 0.0
    %493 = vmatpush.msra.mxu0 0.0
    %494 = vmatpush.msra.mxu0 0.0
    %495 = vmatpush.msra.mxu0 0.0
    %496 = vmatpush.msra.mxu0 0.0
    %497 = vmatpush.msra.mxu0 0.0
    %498 = vmatpush.msra.mxu0 0.0
    %499 = vmatpush.msra.mxu0 0.0
    %500 = vmatpush.msra.mxu0 0.0
    %501 = vmatpush.msra.mxu0 0.0
    %502 = vmatpush.msra.mxu0 0.0
    %503 = vmatpush.msra.mxu0 0.0
    %504 = vmatpush.msra.mxu0 %v381
    %505 = vmatpush.msra.mxu0 %v380
    %506 = vmatmul.f32.gmra.mxu0 %v488
    %v507 = vpop.f32.mrf.mxu0
    %v508 = vadd.f32 0.0, %v507
    %509 = vdwg.mxu0
    %v510 = vadd.f32 %v486, %v508
    %v511 = vrot.slane %v366, 4
    %v512 = vsel %vm293, %v511, 0
    %514 = vmatpush.msra.mxu0 0.0
    %515 = vmatpush.msra.mxu0 0.0
    %516 = vmatpush.msra.mxu0 0.0
    %517 = vmatpush.msra.mxu0 0.0
    %518 = vmatpush.msra.mxu0 0.0
    %519 = vmatpush.msra.mxu0 0.0
    %520 = vmatpush.msra.mxu0 0.0
    %521 = vmatpush.msra.mxu0 0.0
    %522 = vmatpush.msra.mxu0 0.0
    %523 = vmatpush.msra.mxu0 0.0
    %524 = vmatpush.msra.mxu0 0.0
    %525 = vmatpush.msra.mxu0 0.0
    %526 = vmatpush.msra.mxu0 0.0
    %527 = vmatpush.msra.mxu0 0.0
    %528 = vmatpush.msra.mxu0 %v383
    %529 = vmatpush.msra.mxu0 %v382
    %530 = vmatmul.f32.gmra.mxu0 %v512
    %v531 = vpop.f32.mrf.mxu0
    %v532 = vadd.f32 0.0, %v531
    %533 = vdwg.mxu0
    %v534 = vadd.f32 %v510, %v532
    %v536 = vsel %vm293, %v367, 0
    %538 = vmatpush.msra.mxu0 0.0
    %539 = vmatpush.msra.mxu0 0.0
    %540 = vmatpush.msra.mxu0 0.0
    %541 = vmatpush.msra.mxu0 0.0
    %542 = vmatpush.msra.mxu0 0.0
    %543 = vmatpush.msra.mxu0 0.0
    %544 = vmatpush.msra.mxu0 0.0
    %545 = vmatpush.msra.mxu0 0.0
    %546 = vmatpush.msra.mxu0 0.0
    %547 = vmatpush.msra.mxu0 0.0
    %548 = vmatpush.msra.mxu0 0.0
    %549 = vmatpush.msra.mxu0 0.0
    %550 = vmatpush.msra.mxu0 0.0
    %551 = vmatpush.msra.mxu0 0.0
    %552 = vmatpush.msra.mxu0 %v385
    %553 = vmatpush.msra.mxu0 %v384
    %554 = vmatmul.f32.gmra.mxu0 %v536
    %v555 = vpop.f32.mrf.mxu0
    %v556 = vadd.f32 0.0, %v555
    %557 = vdwg.mxu0
    %v558 = vadd.f32 %v534, %v556
    %v559 = vrot.slane %v367, 4
    %v560 = vsel %vm293, %v559, 0
    %562 = vmatpush.msra.mxu0 0.0
    %563 = vmatpush.msra.mxu0 0.0
    %564 = vmatpush.msra.mxu0 0.0
    %565 = vmatpush.msra.mxu0 0.0
    %566 = vmatpush.msra.mxu0 0.0
    %567 = vmatpush.msra.mxu0 0.0
    %568 = vmatpush.msra.mxu0 0.0
    %569 = vmatpush.msra.mxu0 0.0
    %570 = vmatpush.msra.mxu0 0.0
    %571 = vmatpush.msra.mxu0 0.0
    %572 = vmatpush.msra.mxu0 0.0
    %573 = vmatpush.msra.mxu0 0.0
    %574 = vmatpush.msra.mxu0 0.0
    %575 = vmatpush.msra.mxu0 0.0
    %576 = vmatpush.msra.mxu0 %v387
    %577 = vmatpush.msra.mxu0 %v386
    %578 = vmatmul.f32.gmra.mxu0 %v560
    %v579 = vpop.f32.mrf.mxu0
    %v580 = vadd.f32 0.0, %v579
    %581 = vdwg.mxu0
    %v582 = vadd.f32 %v558, %v580
    %v583 = vmax.f32 %v582, 0.0
    %v584 = vld [vmem:[%s6 + $0x1] sm:$0x1]
    %v585 = vld [vmem:[%s5] sm:$0xff]
    %v586 = vld [vmem:[%s5 + $0x8] sm:$0xff]
    %v587 = vld [vmem:[%s5 + $0x10] sm:$0xff]
    %v588 = vld [vmem:[%s5 + $0x18] sm:$0xff]
    %v589 = vld [vmem:[%s5 + $0x20] sm:$0xff]
    %v590 = vld [vmem:[%s5 + $0x28] sm:$0xff]
    %v591 = vld [vmem:[%s5 + $0x30] sm:$0xff]
    %v592 = vld [vmem:[%s5 + $0x38] sm:$0xff]
    %v593 = vperm.slane %v584, 0
    %vm594 = vcmask 523264
    %v596 = vsel %vm594, %v583, 0
    %598 = vmatpush.msra.mxu0 0.0
    %599 = vmatpush.msra.mxu0 0.0
    %600 = vmatpush.msra.mxu0 0.0
    %601 = vmatpush.msra.mxu0 0.0
    %602 = vmatpush.msra.mxu0 0.0
    %603 = vmatpush.msra.mxu0 0.0
    %604 = vmatpush.msra.mxu0 0.0
    %605 = vmatpush.msra.mxu0 0.0
    %606 = vmatpush.msra.mxu0 %v592
    %607 = vmatpush.msra.mxu0 %v591
    %608 = vmatpush.msra.mxu0 %v590
    %609 = vmatpush.msra.mxu0 %v589
    %610 = vmatpush.msra.mxu0 %v588
    %611 = vmatpush.msra.mxu0 %v587
    %612 = vmatpush.msra.mxu0 %v586
    %613 = vmatpush.msra.mxu0 %v585
    %614 = vmatmul.f32.gmra.mxu0 %v596
    %v615 = vpop.f32.mrf.mxu0
    %v616 = vadd.f32 %v593, %v615
    %617 = vdwg.mxu0
    %v618 = vsel %vm171, %v616, -inf
    %619 = vmax.xlane.f32.xlu0 %v618
    %v620 = vpop.xlane.xlu0 %619
    %v621 = vsub.f32 %v616, %v620
    %v622 = vmul.f32 %v621, 1.442695
    %v623 = vpow.pop %v622
    %v624 = vsel %vm171, %v623, 0.0
    %625 = vadd.xlane.f32.xlu0 %v624
    %v626 = vpop.xlane.xlu0 %625
    %v627 = vlog2.pop %v626
    %v628 = vmul.f32 %v627, 0.6931472
    %v629 = vsub.f32 %v621, %v628
    %630 = vst [vmem:[#allocation2] sm:$0xf] %v629
    // Predicated region
    $region30: #{agt_forward.1} parent=1 // pred_check
      _
    $region31: #{agt_forward.1} parent=1 // pred_check_branch
      %632 = sbr.rel (0) target = $region33
    $region32: #{agt_forward.1} parent=1 // pred_region
      _
    $region33: #{agt_forward.1} parent=1 // pred_fallthru
      _
    // Predicated region
    $region34: #{agt_forward.1} parent=1 // pred_check
      _
    $region35: #{agt_forward.1} parent=1 // pred_check_branch
      %634 = sbr.rel (0) target = $region37
    $region36: #{agt_forward.1} parent=1 // pred_region
      %636 = vsyncadd [#allocation3], 0
      %s638 = sshll.u32 [#allocation2], 4
      %s639 = int_to_ptr.vmem [resolvable:$true] %s638
      %s640 = sshll.u32 %s8, 4
      %s641 = int_to_ptr.hbm [resolvable:$true] %s640
      %643 = dma.vmem_to_hbm [thread:$0]  %s639, 64, %s641, [#allocation3]
    $region37: #{agt_forward.1} parent=1 // pred_fallthru
      _
    // Predicated region
    $region38: #{agt_forward.1} parent=1 // pred_check
      _
    $region39: #{agt_forward.1} parent=1 // pred_check_branch
      %645 = sbr.rel (0) target = $region41
    $region40: #{agt_forward.1} parent=1 // pred_region
      _
    $region41: #{agt_forward.1} parent=1 // pred_fallthru
      _
    // Predicated region
    $region42: #{agt_forward.1} parent=1 // pred_check
      _
    $region43: #{agt_forward.1} parent=1 // pred_check_branch
      %647 = sbr.rel (0) target = $region45
    $region44: #{agt_forward.1} parent=1 // pred_region
      %649 = dma.done [#allocation3], 64
    $region45: #{agt_forward.1} parent=1 // pred_fallthru
      _
    %650 = vsyncpa [#allocation3], 1

</llo_original>
